<compile_context>
chip_gen: v5e
topology: v5e:2x2
jax: 0.10.0
libtpu: 0.0.40
codegen_flags: <defaults>
</compile_context>

<pallas_src>
import math
import functools

import jax
import jax.numpy as jnp
from jax.experimental import pallas as pl
from jax.experimental.pallas import tpu as pltpu


def make_positional_encoding(d_model: int, max_len: int = 90) -> jnp.ndarray:
    """Deterministic PE buffer, identical to the PyTorch __init__."""
    position = jnp.arange(max_len, dtype=jnp.float32)[:, None]
    div_term = jnp.exp(
        jnp.arange(0, d_model, 2, dtype=jnp.float32) * (-math.log(10000.0) / d_model)
    )
    pe = jnp.zeros((max_len, d_model), dtype=jnp.float32)
    pe = pe.at[:, 0::2].set(jnp.sin(position * div_term))
    pe = pe.at[:, 1::2].set(jnp.cos(position * div_term))
    return pe


def _mix_u32(v):
    # "lowbias32" integer hash — only xor/shift/mul, lowers everywhere.
    v = v ^ (v >> jnp.uint32(16))
    v = v * jnp.uint32(0x7FEB352D)
    v = v ^ (v >> jnp.uint32(15))
    v = v * jnp.uint32(0x846CA68B)
    v = v ^ (v >> jnp.uint32(16))
    return v


def _pe_add_dropout_kernel(seed_ref, x_ref, pe_ref, o_ref, *, p, training):
    # Elementwise add of the PE tile, then optional in-kernel dropout.
    y = x_ref[...].astype(jnp.float32) + pe_ref[...].astype(jnp.float32)

    if training and p > 0.0:
        if p >= 1.0:
            y = jnp.zeros_like(y)
        else:
            rows, cols = x_ref.shape
            r = jax.lax.broadcasted_iota(jnp.int32, (rows, cols), 0)
            c = jax.lax.broadcasted_iota(jnp.int32, (rows, cols), 1)
            # Global flat element index -> unique per element across all tiles.
            gidx = (pl.program_id(0) * rows + r) * cols + c
            key = seed_ref[0].astype(jnp.uint32) * jnp.uint32(0x9E3779B9)
            bits = _mix_u32(gidx.astype(jnp.uint32) ^ key)
            bits = _mix_u32(bits + key)
            # Integer threshold: drop iff bits < round(p * 2^32).
            threshold = jnp.uint32(min(int(round(p * 2.0 ** 32)), 2 ** 32 - 1))
            keep = bits >= threshold
            y = jnp.where(keep, y * jnp.float32(1.0 / (1.0 - p)), jnp.float32(0.0))

    o_ref[...] = y.astype(o_ref.dtype)


def positional_encoder(x, pe, *, p: float = 0.1, training: bool = False, seed: int = 0):
    """x: (seq_len, d_model). Returns dropout(x + pe[:seq_len])."""
    S, D = x.shape

    # Fold rows into the 128-lane axis when d_model < 128 so every load/store is
    # lane-dense (purely elementwise op, so layout is free to change).
    fold = 1
    if D < 128 and 128 % D == 0:
        f = 128 // D
        if S % f == 0:
            fold = f
    Sf, Df = S // fold, D * fold

    x2 = x.reshape(Sf, Df)
    pe2 = pe[:S].reshape(Sf, Df)

    # Tile the (folded) sequence axis: ~1 MiB per stream per tile, multiple of 8
    # rows (or the full extent), so Pallas double-buffers and pipelines the DMAs.
    if Sf <= 8:
        tile_rows = Sf
    else:
        tile_rows = max(8, ((1 << 20) // (Df * 4)) // 8 * 8)
        tile_rows = min(tile_rows, Sf)

    grid = (pl.cdiv(Sf, tile_rows),)
    kernel = functools.partial(
        _pe_add_dropout_kernel, p=float(p), training=bool(training)
    )

    out = pl.pallas_call(
        kernel,
        out_shape=jax.ShapeDtypeStruct((Sf, Df), x.dtype),
        grid_spec=pltpu.PrefetchScalarGridSpec(
            num_scalar_prefetch=1,  # seed lands in SMEM
            grid=grid,
            in_specs=[
                pl.BlockSpec((tile_rows, Df), lambda i, seed_ref: (i, 0)),  # x
                pl.BlockSpec((tile_rows, Df), lambda i, seed_ref: (i, 0)),  # pe
            ],
            out_specs=pl.BlockSpec((tile_rows, Df), lambda i, seed_ref: (i, 0)),
        ),
        compiler_params=pltpu.CompilerParams(
            dimension_semantics=("parallel",),        # shards tiles across v7x's 2 TCs
            vmem_limit_bytes=32 * 1024 * 1024,        # sized for v7x's 64 MiB VMEM
        ),
    )(jnp.array([seed], dtype=jnp.int32), x2, pe2)

    return out.reshape(S, D)


if __name__ == "__main__":
    d_model = 32
    max_len = 90
    seq_len = 8
    p = 0.1

    key = jax.random.PRNGKey(0)
    x = jax.random.normal(key, (seq_len, d_model), dtype=jnp.float32)
    pe = make_positional_encoding(d_model, max_len)

    # Eval-mode forward (dropout = identity): must match x + pe[:S] exactly.
    out_eval = positional_encoder(x, pe, p=p, training=False)
    jax.block_until_ready(out_eval)
    ref = x + pe[:seq_len]
    assert jnp.allclose(out_eval, ref, atol=1e-6), "eval-mode mismatch"

    # Training-mode forward (exercises the in-kernel dropout path).
    # TODO(synk): dropout mask bit-pattern differs from torch's RNG (statistically
    # equivalent inverted dropout, not bit-identical to nn.Dropout).
    out_train = positional_encoder(x, pe, p=p, training=True, seed=1234)
    jax.block_until_ready(out_train)
    kept = out_train != 0.0
    assert jnp.allclose(
        jnp.where(kept, out_train * (1.0 - p), 0.0),
        jnp.where(kept, ref, 0.0),
        atol=1e-5,
    ), "train-mode mismatch"

    print("KERNEL_OK")
</pallas_src>

<mosaic_0001>
module attributes {stable_mosaic.version = 11 : i64} {
  func.func @_pe_add_dropout_kernel(%arg0: i32, %arg1: memref<1xi32, #tpu.memory_space<smem>>, %arg2: memref<2x128xf32, #tpu.memory_space<vmem>>, %arg3: memref<2x128xf32, #tpu.memory_space<vmem>>, %arg4: memref<2x128xf32, #tpu.memory_space<vmem>>) attributes {dimension_semantics = [#tpu.dimension_semantics<parallel>], iteration_bounds = array<i64: 1>, scalar_prefetch = 1 : i64, scratch_operands = 0 : i64, tpu.core_type = #tpu.core_type<tc>, window_params = [{transform_indices = @transform_0, window_bounds = array<i64: 2, 128>}, {transform_indices = @transform_1, window_bounds = array<i64: 2, 128>}, {transform_indices = @transform_2, window_bounds = array<i64: 2, 128>}]} {
    %c0 = arith.constant 0 : index
    %c0_0 = arith.constant 0 : index
    %0 = vector.load %arg2[%c0, %c0_0] : memref<2x128xf32, #tpu.memory_space<vmem>>, vector<2x128xf32>
    %c0_1 = arith.constant 0 : index
    %c0_2 = arith.constant 0 : index
    %1 = vector.load %arg3[%c0_1, %c0_2] : memref<2x128xf32, #tpu.memory_space<vmem>>, vector<2x128xf32>
    %2 = arith.addf %0, %1 : vector<2x128xf32>
    %c0_3 = arith.constant 0 : index
    %c0_4 = arith.constant 0 : index
    %3 = vector.load %arg4[%c0_3, %c0_4] : memref<2x128xf32, #tpu.memory_space<vmem>>, vector<2x128xf32>
    tpu.vector_store %arg4[%c0_3, %c0_4], %2 {strides = array<i32>} : memref<2x128xf32, #tpu.memory_space<vmem>>, vector<2x128xf32>,
    return
  }
  func.func @transform_0(%arg0: i32, %arg1: memref<1xi32, #tpu.memory_space<smem>>) -> (i32, i32) {
    %c0_i32 = arith.constant 0 : i32
    %c0_i32_0 = arith.constant 0 : i32
    return %arg0, %c0_i32 : i32, i32
  }
  func.func @transform_1(%arg0: i32, %arg1: memref<1xi32, #tpu.memory_space<smem>>) -> (i32, i32) {
    %c0_i32 = arith.constant 0 : i32
    %c0_i32_0 = arith.constant 0 : i32
    return %arg0, %c0_i32 : i32, i32
  }
  func.func @transform_2(%arg0: i32, %arg1: memref<1xi32, #tpu.memory_space<smem>>) -> (i32, i32) {
    %c0_i32 = arith.constant 0 : i32
    %c0_i32_0 = arith.constant 0 : i32
    return %arg0, %c0_i32 : i32, i32
  }
}

</mosaic_0001>

<llo_original>
// kernel: tpu_custom_call.1
$region0: #{tpu_custom_call.1}
  #allocation0 [shape = 'u32[]', space=smem, size = 0x4, offset = 0x4, fixed_abs, tag = 'smem constant byte address 0x4 - core index']
  #allocation1 [shape = 'u32[72,128]{1,0:T(1,128)}', space=vmem, size = 0x9000, scoped, tag = 'internal scratch']
  #allocation2 [shape = 's32[1]{0}', space=sflag, size = 0x4, scoped, tag = 'scoped memory for tpu_custom_call.1']
  #allocation3 [shape = 's32[1]{0:T(128)S(6)}', space=smem, size = 0x200, scoped, tag = 'prefetched SMEM operand 0']
  %s0 = inlined_call_operand.<no memory space> [shape: s32[1], index: 0, kind: input, shape index: {}]
  %s1 = inlined_call_operand.vmem [shape: f32[2,128], index: 1, kind: input, shape index: {}]
  %s2 = inlined_call_operand.hbm [shape: f32[2,128], index: 2, kind: input, shape index: {}]
  %s3 = inlined_call_operand.hbm [shape: f32[2,128], index: 3, kind: output, shape index: {}]
  %s4 = sld [smem:[#allocation0]]
  $region22: #{tpu_custom_call.1} parent=0
    _
  %s6 = ssub.s32 1, %s4
  %s7 = scalar_select 0, %s6, %s4
  %8 = sst [smem:[#allocation3]] %s0
  $region1: #{tpu_custom_call.1} parent=0
    #allocation4 [shape = 'u8[1024]{0}', space=vmem, size = 0x400, scoped, tag = 'input window, operand 2, single buffered']
    #allocation5 [shape = 's32[1]{0}', space=sflag, size = 0x4, scoped, tag = 'scoped memory for tpu_custom_call.1']
    #allocation6 [shape = 's32[1]{0}', space=sflag, size = 0x4, scoped, tag = 'scoped memory for tpu_custom_call.1']
    #allocation7 [shape = 'u8[1024]{0}', space=vmem, size = 0x400, scoped, tag = 'output window, operand 0, single buffered']
    %9 = vsyncpa [#allocation5], 0
    %10 = vsyncpa [#allocation6], 0
    // Predicated region
    $region2: #{tpu_custom_call.1} parent=1 // pred_check
      _
    $region3: #{tpu_custom_call.1} parent=1 // pred_check_branch
      %12 = sbr.rel (0) target = $region5
    $region4: #{tpu_custom_call.1} parent=1 // pred_region
      _
    $region5: #{tpu_custom_call.1} parent=1 // pred_fallthru
      _
    // Predicated region
    $region6: #{tpu_custom_call.1} parent=1 // pred_check
      _
    $region7: #{tpu_custom_call.1} parent=1 // pred_check_branch
      %14 = sbr.rel (0) target = $region9
    $region8: #{tpu_custom_call.1} parent=1 // pred_region
      %16 = vsyncadd [#allocation5], 0
      %s18 = sshll.u32 %s2, 4
      %s19 = int_to_ptr.hbm [resolvable:$true] %s18
      %s20 = sshll.u32 [#allocation4], 4
      %s21 = int_to_ptr.vmem [resolvable:$true] %s20
      %23 = dma.hbm_to_vmem [thread:$0]  %s19, 32, %s21, [#allocation5]
    $region9: #{tpu_custom_call.1} parent=1 // pred_fallthru
      _
    // Predicated region
    $region10: #{tpu_custom_call.1} parent=1 // pred_check
      _
    $region11: #{tpu_custom_call.1} parent=1 // pred_check_branch
      %25 = sbr.rel (0) target = $region13
    $region12: #{tpu_custom_call.1} parent=1 // pred_region
      %27 = dma.done [#allocation5], 32
    $region13: #{tpu_custom_call.1} parent=1 // pred_fallthru
      _
    %v28 = vld [vmem:[%s1] sm:$0x3]
    %v29 = vld [vmem:[#allocation4] sm:$0x3]
    %v30 = vadd.f32 %v28, %v29
    %31 = vst [vmem:[#allocation7] sm:$0x3] %v30
    // Predicated region
    $region14: #{tpu_custom_call.1} parent=1 // pred_check
      _
    $region15: #{tpu_custom_call.1} parent=1 // pred_check_branch
      %33 = sbr.rel (0) target = $region17
    $region16: #{tpu_custom_call.1} parent=1 // pred_region
      %35 = vsyncadd [#allocation6], 0
      %s37 = sshll.u32 [#allocation7], 4
      %s38 = int_to_ptr.vmem [resolvable:$true] %s37
      %s39 = sshll.u32 %s3, 4
      %s40 = int_to_ptr.hbm [resolvable:$true] %s39
      %42 = dma.vmem_to_hbm [thread:$0]  %s38, 32, %s40, [#allocation6]
    $region17: #{tpu_custom_call.1} parent=1 // pred_fallthru
      _
    // Predicated region
    $region18: #{tpu_custom_call.1} parent=1 // pred_check
      _
    $region19: #{tpu_custom_call.1} parent=1 // pred_check_branch
      %44 = sbr.rel (0) target = $region21
    $region20: #{tpu_custom_call.1} parent=1 // pred_region
      %46 = dma.done [#allocation6], 32
    $region21: #{tpu_custom_call.1} parent=1 // pred_fallthru
      _
    %47 = vsyncpa [#allocation5], 1
    %48 = vsyncpa [#allocation6], 1

</llo_original>
